<compile_context>
chip_gen: v6e
topology: v6e:2x2x1
jax: 0.10.0
libtpu: 0.0.40
codegen_flags: <defaults>
</compile_context>

<pallas_src>
import jax
import jax.numpy as jnp
from jax.experimental import pallas as pl
from jax.experimental.pallas import tpu as pltpu


def _make_quantile_loss_kernel(n_rows, tm, inv_n):
    """Builds the kernel body, closing over static problem parameters."""

    def kernel(preds_ref, tgt_ref, q_ref, out_ref, acc_ref):
        i = pl.program_id(0)

        @pl.when(i == 0)
        def _init():
            acc_ref[...] = jnp.zeros_like(acc_ref)

        preds = preds_ref[...].astype(jnp.float32)      # (tm, Q)
        tgt = tgt_ref[...].astype(jnp.float32)          # (tm, 1)
        q = q_ref[...].astype(jnp.float32)              # (1, Q)

        # Pinball / quantile loss per element.
        e = tgt - preds                                 # (tm, Q)
        l = jnp.maximum((q - 1.0) * e, q * e)           # (tm, Q)

        # Mask the ragged tail of the last block (rows >= n_rows contribute 0).
        row = i * tm + jax.lax.broadcasted_iota(jnp.int32, l.shape, 0)
        l = jnp.where(row < n_rows, l, 0.0)

        # Accumulate the tile sum into the resident (1,1) accumulator.
        acc_ref[...] = acc_ref[...] + jnp.sum(l, keepdims=True)

        @pl.when(i == pl.num_programs(0) - 1)
        def _finalize():
            out_ref[...] = acc_ref[...] * inv_n

    return kernel


def quantile_loss(preds, target, quantiles, *, tm=1024):
    """JAX/Pallas equivalent of QuantileLoss(quantiles)(preds, target).

    preds:  (N, Q) float array
    target: (N,)   float array
    quantiles: sequence of Q python floats
    Returns a scalar f32 loss.
    """
    preds = jnp.asarray(preds)
    target = jnp.asarray(target)
    N, Q = preds.shape
    assert target.shape[0] == N, (target.shape, preds.shape)
    assert len(quantiles) == Q

    target2d = target.reshape(N, 1)
    q_arr = jnp.asarray(quantiles, dtype=jnp.float32).reshape(1, Q)

    # Row tile: multiple of 8 (sublane alignment), as large as useful but not
    # (much) larger than the problem.  VMEM footprint per buffer is tiny
    # (tm * (Q + 1) * 4 bytes), so even tm=1024+ is far under any VMEM limit.
    tm = max(8, min(int(tm), ((N + 7) // 8) * 8))
    grid = (pl.cdiv(N, tm),)
    inv_n = 1.0 / float(N)

    cost = pl.CostEstimate(
        flops=4 * N * Q,
        transcendentals=0,
        bytes_accessed=(N * Q + N + Q) * 4 + 4,
    )

    out = pl.pallas_call(
        _make_quantile_loss_kernel(N, tm, inv_n),
        out_shape=jax.ShapeDtypeStruct((1, 1), jnp.float32),
        grid_spec=pltpu.PrefetchScalarGridSpec(
            num_scalar_prefetch=0,
            grid=grid,
            in_specs=[
                pl.BlockSpec((tm, Q), lambda i: (i, 0)),   # preds row tile
                pl.BlockSpec((tm, 1), lambda i: (i, 0)),   # target row tile
                pl.BlockSpec((1, Q), lambda i: (0, 0)),    # quantiles (resident)
            ],
            out_specs=pl.BlockSpec((1, 1), lambda i: (0, 0)),
            scratch_shapes=[pltpu.VMEM((1, 1), jnp.float32)],
        ),
        compiler_params=pltpu.CompilerParams(
            dimension_semantics=("arbitrary",)),   # reduction axis
        cost_estimate=cost,
    )(preds, target2d, q_arr)
    return out[0, 0]


def quantile_loss_ref(preds, target, quantiles):
    """Pure-JAX reference with the same semantics as the PyTorch module."""
    q = jnp.asarray(quantiles, dtype=jnp.float32)[None, :]
    e = target[:, None].astype(jnp.float32) - preds.astype(jnp.float32)
    l = jnp.maximum((q - 1.0) * e, q * e)
    return jnp.mean(jnp.sum(l, axis=1))


if __name__ == "__main__":
    key = jax.random.PRNGKey(0)
    k1, k2, k3, k4 = jax.random.split(key, 4)

    quantiles = (0.1, 0.5, 0.9)
    Q = len(quantiles)

    # Case 1: small batch, single grid step (default large tile clamps to N).
    N = 64
    preds = jax.random.normal(k1, (N, Q), dtype=jnp.float32)
    target = jax.random.normal(k2, (N,), dtype=jnp.float32)
    loss = jax.block_until_ready(quantile_loss(preds, target, quantiles))
    loss_ref = quantile_loss_ref(preds, target, quantiles)
    assert loss.shape == (), loss.shape
    assert jnp.allclose(loss, loss_ref, atol=1e-5, rtol=1e-5), (loss, loss_ref)

    # Case 2: ragged N with a multi-step grid (exercises masking + the
    # init/accumulate/finalize pipeline across grid steps).
    N2 = 37
    preds2 = jax.random.normal(k3, (N2, Q), dtype=jnp.float32)
    target2 = jax.random.normal(k4, (N2,), dtype=jnp.float32)
    loss2 = jax.block_until_ready(
        quantile_loss(preds2, target2, quantiles, tm=16))
    loss2_ref = quantile_loss_ref(preds2, target2, quantiles)
    assert jnp.allclose(loss2, loss2_ref, atol=1e-5, rtol=1e-5), (loss2,
                                                                  loss2_ref)

    print("KERNEL_OK")
</pallas_src>

<mosaic_0001>
module attributes {stable_mosaic.version = 11 : i64} {
  func.func @kernel(%arg0: i32, %arg1: memref<64x3xf32, #tpu.memory_space<vmem>>, %arg2: memref<64x1xf32, #tpu.memory_space<vmem>>, %arg3: memref<1x3xf32, #tpu.memory_space<vmem>>, %arg4: memref<1x1xf32, #tpu.memory_space<vmem>>, %arg5: memref<1x1xf32, #tpu.memory_space<vmem>>) attributes {dimension_semantics = [#tpu.dimension_semantics<arbitrary>], iteration_bounds = array<i64: 1>, scalar_prefetch = 0 : i64, scratch_operands = 1 : i64, tpu.core_type = #tpu.core_type<tc>, window_params = [{transform_indices = @transform_0, window_bounds = array<i64: 64, 3>}, {transform_indices = @transform_1, window_bounds = array<i64: 64, 1>}, {pipeline_mode = #tpu.pipeline_mode<synchronous>, transform_indices = @transform_2, window_bounds = array<i64: 1, 3>}, {pipeline_mode = #tpu.pipeline_mode<synchronous>, transform_indices = @transform_3, window_bounds = array<i64: 1, 1>}]} {
    %c0_i32 = arith.constant 0 : i32
    %0 = arith.cmpi eq, %arg0, %c0_i32 : i32
    %1 = arith.extui %0 : i1 to i32
    %c0_i32_0 = arith.constant 0 : i32
    %2 = arith.cmpi ne, %1, %c0_i32_0 : i32
    scf.if %2 {
      %cst_15 = arith.constant 0.000000e+00 : f32
      %34 = vector.broadcast %cst_15 : f32 to vector<1x1xf32>
      %c0_16 = arith.constant 0 : index
      %c0_17 = arith.constant 0 : index
      %35 = vector.load %arg5[%c0_16, %c0_17] : memref<1x1xf32, #tpu.memory_space<vmem>>, vector<1x1xf32>
      tpu.vector_store %arg5[%c0_16, %c0_17], %34 {strides = array<i32>} : memref<1x1xf32, #tpu.memory_space<vmem>>, vector<1x1xf32>,
    } else {
    }
    %c0 = arith.constant 0 : index
    %c0_1 = arith.constant 0 : index
    %3 = vector.load %arg1[%c0, %c0_1] : memref<64x3xf32, #tpu.memory_space<vmem>>, vector<64x3xf32>
    %c0_2 = arith.constant 0 : index
    %c0_3 = arith.constant 0 : index
    %4 = vector.load %arg2[%c0_2, %c0_3] : memref<64x1xf32, #tpu.memory_space<vmem>>, vector<64x1xf32>
    %c0_4 = arith.constant 0 : index
    %c0_5 = arith.constant 0 : index
    %5 = vector.load %arg3[%c0_4, %c0_5] : memref<1x3xf32, #tpu.memory_space<vmem>>, vector<1x3xf32>
    %6 = vector.broadcast %4 : vector<64x1xf32> to vector<64x3xf32>
    %7 = arith.subf %6, %3 : vector<64x3xf32>
    %cst = arith.constant 1.000000e+00 : f32
    %8 = vector.broadcast %cst : f32 to vector<1x3xf32>
    %9 = arith.subf %5, %8 : vector<1x3xf32>
    %10 = vector.broadcast %9 : vector<1x3xf32> to vector<64x3xf32>
    %11 = arith.mulf %10, %7 : vector<64x3xf32>
    %12 = vector.broadcast %5 : vector<1x3xf32> to vector<64x3xf32>
    %13 = arith.mulf %12, %7 : vector<64x3xf32>
    %14 = arith.maximumf %11, %13 : vector<64x3xf32>
    %c64_i32 = arith.constant 64 : i32
    %15 = arith.muli %arg0, %c64_i32 : i32
    %16 = tpu.iota {dimensions = array<i32: 0>} : vector<64x3xi32>
    %17 = vector.broadcast %15 : i32 to vector<64x3xi32>
    %18 = arith.addi %17, %16 : vector<64x3xi32>
    %c64_i32_6 = arith.constant 64 : i32
    %19 = vector.broadcast %c64_i32_6 : i32 to vector<64x3xi32>
    %20 = arith.cmpi slt, %18, %19 : vector<64x3xi32>
    %cst_7 = arith.constant 0.000000e+00 : f32
    %21 = vector.broadcast %cst_7 : f32 to vector<64x3xf32>
    %22 = arith.select %20, %14, %21 : vector<64x3xi1>, vector<64x3xf32>
    %c0_8 = arith.constant 0 : index
    %c0_9 = arith.constant 0 : index
    %23 = vector.load %arg5[%c0_8, %c0_9] : memref<1x1xf32, #tpu.memory_space<vmem>>, vector<1x1xf32>
    %24 = vector.shape_cast %22 : vector<64x3xf32> to vector<1x64x3xf32>
    %cst_10 = arith.constant dense<0.000000e+00> : vector<1xf32>
    %25 = vector.multi_reduction <add>, %24, %cst_10 [1, 2] : vector<1x64x3xf32> to vector<1xf32>
    %26 = vector.shape_cast %25 : vector<1xf32> to vector<1x1x1xf32>
    %27 = vector.extract %26[0, 0, 0] : f32 from vector<1x1x1xf32>
    %28 = vector.broadcast %27 : f32 to vector<1x1xf32>
    %29 = arith.addf %23, %28 : vector<1x1xf32>
    %c0_11 = arith.constant 0 : index
    %c0_12 = arith.constant 0 : index
    %30 = vector.load %arg5[%c0_11, %c0_12] : memref<1x1xf32, #tpu.memory_space<vmem>>, vector<1x1xf32>
    tpu.vector_store %arg5[%c0_11, %c0_12], %29 {strides = array<i32>} : memref<1x1xf32, #tpu.memory_space<vmem>>, vector<1x1xf32>,
    %c0_i32_13 = arith.constant 0 : i32
    %31 = arith.cmpi eq, %arg0, %c0_i32_13 : i32
    %32 = arith.extui %31 : i1 to i32
    %c0_i32_14 = arith.constant 0 : i32
    %33 = arith.cmpi ne, %32, %c0_i32_14 : i32
    scf.if %33 {
      %c0_15 = arith.constant 0 : index
      %c0_16 = arith.constant 0 : index
      %34 = vector.load %arg5[%c0_15, %c0_16] : memref<1x1xf32, #tpu.memory_space<vmem>>, vector<1x1xf32>
      %cst_17 = arith.constant 1.562500e-02 : f32
      %35 = vector.broadcast %cst_17 : f32 to vector<1x1xf32>
      %36 = arith.mulf %34, %35 : vector<1x1xf32>
      %c0_18 = arith.constant 0 : index
      %c0_19 = arith.constant 0 : index
      %37 = vector.load %arg4[%c0_18, %c0_19] : memref<1x1xf32, #tpu.memory_space<vmem>>, vector<1x1xf32>
      tpu.vector_store %arg4[%c0_18, %c0_19], %36 {strides = array<i32>} : memref<1x1xf32, #tpu.memory_space<vmem>>, vector<1x1xf32>,
    } else {
    }
    return
  }
  func.func @transform_0(%arg0: i32) -> (i32, i32) {
    %c0_i32 = arith.constant 0 : i32
    %c0_i32_0 = arith.constant 0 : i32
    return %arg0, %c0_i32 : i32, i32
  }
  func.func @transform_1(%arg0: i32) -> (i32, i32) {
    %c0_i32 = arith.constant 0 : i32
    %c0_i32_0 = arith.constant 0 : i32
    return %arg0, %c0_i32 : i32, i32
  }
  func.func @transform_2(%arg0: i32) -> (i32, i32) {
    %c0_i32 = arith.constant 0 : i32
    %c0_i32_0 = arith.constant 0 : i32
    %c0_i32_1 = arith.constant 0 : i32
    return %c0_i32, %c0_i32_0 : i32, i32
  }
  func.func @transform_3(%arg0: i32) -> (i32, i32) {
    %c0_i32 = arith.constant 0 : i32
    %c0_i32_0 = arith.constant 0 : i32
    %c0_i32_1 = arith.constant 0 : i32
    return %c0_i32, %c0_i32_0 : i32, i32
  }
}

</mosaic_0001>

<llo_original>
// kernel: tpu_custom_call.1
$region0: #{tpu_custom_call.1}
  #allocation0 [shape = 'u32[]', space=smem, size = 0x4, offset = 0x4, fixed_abs, tag = 'smem constant byte address 0x4 - core index']
  #allocation1 [shape = 'u32[144,128]{1,0:T(1,128)}', space=vmem, size = 0x12000, scoped, tag = 'internal scratch']
  #allocation2 [shape = 'f32[1,1]{1,0:T(1,128)}', space=vmem, size = 0x200, scoped, tag = 'scratch operand']
  %s0 = inlined_call_operand.vmem [shape: f32[64,3], index: 0, kind: input, shape index: {}]
  %s1 = inlined_call_operand.vmem [shape: f32[64,1], index: 1, kind: input, shape index: {}]
  %s2 = inlined_call_operand.vmem [shape: f32[1,3], index: 2, kind: input, shape index: {}]
  %s3 = inlined_call_operand.hbm [shape: f32[1,1], index: 3, kind: output, shape index: {}]
  %s4 = sld [smem:[#allocation0]]
  $region30: #{tpu_custom_call.1} parent=0
    _
  %s6 = ssub.s32 1, %s4
  %s7 = scalar_select 0, %s6, %s4
  $region1: #{tpu_custom_call.1} parent=0
    #allocation3 [shape = 'u8[512]{0}', space=vmem, size = 0x400, scoped, tag = 'output window, operand 0, single buffered']
    #allocation4 [shape = 's32[1]{0}', space=sflag, size = 0x4, scoped, tag = 'scoped memory for tpu_custom_call.1']
    %8 = vsyncpa [#allocation4], 0
    // Predicated region
    $region2: #{tpu_custom_call.1} parent=1 // pred_check
      _
    $region3: #{tpu_custom_call.1} parent=1 // pred_check_branch
      %10 = sbr.rel (0) target = $region5
    $region4: #{tpu_custom_call.1} parent=1 // pred_region
      _
    $region5: #{tpu_custom_call.1} parent=1 // pred_fallthru
      _
    // Predicated region
    $region6: #{tpu_custom_call.1} parent=1 // pred_check
      _
    $region7: #{tpu_custom_call.1} parent=1 // pred_check_branch
      %12 = sbr.rel (0) target = $region9
    $region8: #{tpu_custom_call.1} parent=1 // pred_region
      _
    $region9: #{tpu_custom_call.1} parent=1 // pred_fallthru
      _
    // Predicated region
    $region10: #{tpu_custom_call.1} parent=1 // pred_check
      _
    $region11: #{tpu_custom_call.1} parent=1 // pred_check_branch
      %14 = sbr.rel (0) target = $region13
    $region12: #{tpu_custom_call.1} parent=1 // pred_region
      _
    $region13: #{tpu_custom_call.1} parent=1 // pred_fallthru
      _
    %p15 = scmp.eq.s32.totalorder 0, 0
    // Predicated region
    $region14: #{tpu_custom_call.1} parent=1 // pred_check
      %p16 = pneg %p15
    $region15: #{tpu_custom_call.1} parent=1 // pred_check_branch
      %18 = sbr.rel (%p16) target = $region17
    $region16: #{tpu_custom_call.1} parent=1 // pred_region
      %vm19 = vcmask 0
      %20 = vst.msk [vmem:[#allocation2] sm:$0x1] %vm19, 0.0
    $region17: #{tpu_custom_call.1} parent=1 // pred_fallthru
      _
    %v21 = vld [vmem:[%s0] sm:$0xff]
    %v22 = vld [vmem:[%s0 + $0x8] sm:$0xff]
    %v23 = vld [vmem:[%s0 + $0x10] sm:$0xff]
    %v24 = vld [vmem:[%s0 + $0x18] sm:$0xff]
    %v25 = vld [vmem:[%s0 + $0x20] sm:$0xff]
    %v26 = vld [vmem:[%s0 + $0x28] sm:$0xff]
    %v27 = vld [vmem:[%s0 + $0x30] sm:$0xff]
    %v28 = vld [vmem:[%s0 + $0x38] sm:$0xff]
    %v29 = vld [vmem:[%s1] sm:$0xff]
    %v30 = vld [vmem:[%s1 + $0x8] sm:$0xff]
    %v31 = vld [vmem:[%s1 + $0x10] sm:$0xff]
    %v32 = vld [vmem:[%s1 + $0x18] sm:$0xff]
    %v33 = vld [vmem:[%s1 + $0x20] sm:$0xff]
    %v34 = vld [vmem:[%s1 + $0x28] sm:$0xff]
    %v35 = vld [vmem:[%s1 + $0x30] sm:$0xff]
    %v36 = vld [vmem:[%s1 + $0x38] sm:$0xff]
    %v37 = vld [vmem:[%s2] sm:$0x1]
    %39 = vset.pattern.permute.xlu0 0
    %40 = vperm.xlu0 %39, %v29
    %v41 = vpop.permute.xlu0 %40
    %44 = vset.pattern.permute.xlu0 0
    %45 = vperm.xlu0 %44, %v30
    %v46 = vpop.permute.xlu0 %45
    %49 = vset.pattern.permute.xlu0 0
    %50 = vperm.xlu0 %49, %v31
    %v51 = vpop.permute.xlu0 %50
    %54 = vset.pattern.permute.xlu0 0
    %55 = vperm.xlu0 %54, %v32
    %v56 = vpop.permute.xlu0 %55
    %59 = vset.pattern.permute.xlu0 0
    %60 = vperm.xlu0 %59, %v33
    %v61 = vpop.permute.xlu0 %60
    %64 = vset.pattern.permute.xlu0 0
    %65 = vperm.xlu0 %64, %v34
    %v66 = vpop.permute.xlu0 %65
    %69 = vset.pattern.permute.xlu0 0
    %70 = vperm.xlu0 %69, %v35
    %v71 = vpop.permute.xlu0 %70
    %74 = vset.pattern.permute.xlu0 0
    %75 = vperm.xlu0 %74, %v36
    %v76 = vpop.permute.xlu0 %75
    %v78 = vsub.f32 %v41, %v21
    %v79 = vsub.f32 %v46, %v22
    %v80 = vsub.f32 %v51, %v23
    %v81 = vsub.f32 %v56, %v24
    %v82 = vsub.f32 %v61, %v25
    %v83 = vsub.f32 %v66, %v26
    %v84 = vsub.f32 %v71, %v27
    %v85 = vsub.f32 %v76, %v28
    %v86 = vsub.f32 %v37, 1.0
    %v88 = vlaneseq
    %v89 = vshrl.u32 %v88, 7
    %v90 = vsub.s32 0, %v89
    %v91 = vrot.slane %v86, %v90
    %v93 = vmul.f32 %v91, %v78
    %v94 = vmul.f32 %v91, %v79
    %v95 = vmul.f32 %v91, %v80
    %v96 = vmul.f32 %v91, %v81
    %v97 = vmul.f32 %v91, %v82
    %v98 = vmul.f32 %v91, %v83
    %v99 = vmul.f32 %v91, %v84
    %v100 = vmul.f32 %v91, %v85
    %v102 = vlaneseq
    %v103 = vshrl.u32 %v102, 7
    %v104 = vsub.s32 0, %v103
    %v105 = vrot.slane %v37, %v104
    %v107 = vmul.f32 %v105, %v78
    %v108 = vmul.f32 %v105, %v79
    %v109 = vmul.f32 %v105, %v80
    %v110 = vmul.f32 %v105, %v81
    %v111 = vmul.f32 %v105, %v82
    %v112 = vmul.f32 %v105, %v83
    %v113 = vmul.f32 %v105, %v84
    %v114 = vmul.f32 %v105, %v85
    %v115 = vmax.f32 %v93, %v107
    %v116 = vmax.f32 %v94, %v108
    %v117 = vmax.f32 %v95, %v109
    %v118 = vmax.f32 %v96, %v110
    %v119 = vmax.f32 %v97, %v111
    %v120 = vmax.f32 %v98, %v112
    %v121 = vmax.f32 %v99, %v113
    %v122 = vmax.f32 %v100, %v114
    %s123 = smul.u32 0, 64
    %v124 = vlaneseq
    %v125 = vshrl.u32 %v124, 7
    %v126 = vadd.s32 %v125, 8
    %v127 = vadd.s32 %v125, 16
    %v128 = vadd.s32 %v125, 24
    %v129 = vadd.s32 %v125, 32
    %v130 = vadd.s32 %v125, 40
    %v131 = vadd.s32 %v125, 48
    %v132 = vadd.s32 %v125, 56
    %v133 = vstv %s123
    %v134 = vadd.s32 %v133, %v125
    %v135 = vadd.s32 %v133, %v126
    %v136 = vadd.s32 %v133, %v127
    %v137 = vadd.s32 %v133, %v128
    %v138 = vadd.s32 %v133, %v129
    %v139 = vadd.s32 %v133, %v130
    %v140 = vadd.s32 %v133, %v131
    %v141 = vadd.s32 %v133, %v132
    %vm142 = vcmp.lt.s32.totalorder %v134, 64
    %vm143 = vcmp.lt.s32.totalorder %v135, 64
    %vm144 = vcmp.lt.s32.totalorder %v136, 64
    %vm145 = vcmp.lt.s32.totalorder %v137, 64
    %vm146 = vcmp.lt.s32.totalorder %v138, 64
    %vm147 = vcmp.lt.s32.totalorder %v139, 64
    %vm148 = vcmp.lt.s32.totalorder %v140, 64
    %vm149 = vcmp.lt.s32.totalorder %v141, 64
    %v150 = vsel %vm142, %v115, 0.0
    %v151 = vsel %vm143, %v116, 0.0
    %v152 = vsel %vm144, %v117, 0.0
    %v153 = vsel %vm145, %v118, 0.0
    %v154 = vsel %vm146, %v119, 0.0
    %v155 = vsel %vm147, %v120, 0.0
    %v156 = vsel %vm148, %v121, 0.0
    %v157 = vsel %vm149, %v122, 0.0
    %v158 = vld [vmem:[#allocation2] sm:$0x1]
    %vm159 = vcmask 23552
    %v160 = vsel %vm159, %v150, 0.0
    %v161 = vsel %vm159, %v151, 0.0
    %v162 = vadd.f32 %v160, %v161
    %v163 = vsel %vm159, %v152, 0.0
    %v164 = vadd.f32 %v162, %v163
    %v165 = vsel %vm159, %v153, 0.0
    %v166 = vadd.f32 %v164, %v165
    %v167 = vsel %vm159, %v154, 0.0
    %v168 = vadd.f32 %v166, %v167
    %v169 = vsel %vm159, %v155, 0.0
    %v170 = vadd.f32 %v168, %v169
    %v171 = vsel %vm159, %v156, 0.0
    %v172 = vadd.f32 %v170, %v171
    %v173 = vsel %vm159, %v157, 0.0
    %v174 = vadd.f32 %v172, %v173
    %175 = vadd.xlane.f32.xlu0 %v174
    %v176 = vpop.xlane.xlu0 %175
    %v177 = vrot.slane %v176, 4
    %v178 = vadd.f32 %v176, %v177
    %v179 = vrot.slane %v178, 2
    %v180 = vadd.f32 %v178, %v179
    %v181 = vrot.slane %v180, 1
    %v182 = vadd.f32 %v180, %v181
    %s183 = vtos %v182
    %v184 = vstv %s183
    %v185 = vadd.f32 %v158, %v184
    %vm186 = vcmask 0
    %187 = vst.msk [vmem:[#allocation2] sm:$0x1] %vm186, %v185
    // Predicated region
    $region18: #{tpu_custom_call.1} parent=1 // pred_check
      %p188 = pneg %p15
    $region19: #{tpu_custom_call.1} parent=1 // pred_check_branch
      %190 = sbr.rel (%p188) target = $region21
    $region20: #{tpu_custom_call.1} parent=1 // pred_region
      %v191 = vld [vmem:[#allocation2] sm:$0x1]
      %v192 = vmul.f32 %v191, 0.015625
      %193 = vst.msk [vmem:[#allocation3] sm:$0x1] %vm186, %v192
    $region21: #{tpu_custom_call.1} parent=1 // pred_fallthru
      _
    // Predicated region
    $region22: #{tpu_custom_call.1} parent=1 // pred_check
      _
    $region23: #{tpu_custom_call.1} parent=1 // pred_check_branch
      %195 = sbr.rel (0) target = $region25
    $region24: #{tpu_custom_call.1} parent=1 // pred_region
      %s197 = ssub.s32 16, 16
      %198 = vsyncadd [#allocation4], %s197
      %s200 = sshll.u32 [#allocation3], 4
      %s201 = int_to_ptr.vmem [resolvable:$true] %s200
      %203 = dma.vmem_to_hbm [thread:$0]  %s201, 16, %s3, [#allocation4]
    $region25: #{tpu_custom_call.1} parent=1 // pred_fallthru
      _
    // Predicated region
    $region26: #{tpu_custom_call.1} parent=1 // pred_check
      _
    $region27: #{tpu_custom_call.1} parent=1 // pred_check_branch
      %205 = sbr.rel (0) target = $region29
    $region28: #{tpu_custom_call.1} parent=1 // pred_region
      %206 = dma.done [#allocation4], 16
    $region29: #{tpu_custom_call.1} parent=1 // pred_fallthru
      _
    %207 = vsyncpa [#allocation4], 1

</llo_original>
